<compile_context>
chip_gen: v7x
topology: tpu7x:2x2x1
jax: 0.10.0
libtpu: 0.0.40
codegen_flags: <defaults>
</compile_context>

<pallas_src>
import math
import functools

import jax
import jax.numpy as jnp
from jax.experimental import pallas as pl
from jax.experimental.pallas import tpu as pltpu


def _round_up(x, m):
    return ((x + m - 1) // m) * m


def _choose_tn(out_size, max_tn=512):
    # Lane-dense N tile: multiple of 128, capped so a double-buffered bf16
    # (zsize, tn) weight tile stays tiny relative to VMEM on all chips.
    return min(max_tn, _round_up(out_size, 128))


def _choose_tm(batch, max_tm=128):
    return min(max_tm, _round_up(batch, 8))


def _linear_sigmoid_kernel(x_ref, w_ref, b_ref, o_ref):
    # x_ref: (tm, K) bf16   w_ref: (K, tn) bf16   b_ref: (1, tn) f32
    # o_ref: (tm, tn) f32
    acc = jnp.dot(x_ref[...], w_ref[...], preferred_element_type=jnp.float32)
    acc = acc + b_ref[...]                       # f32 epilogue
    o_ref[...] = jax.nn.sigmoid(acc).astype(o_ref.dtype)


def prepare_linear_params(weight, bias):
    """One-time parameter prep (do NOT call per forward pass).

    weight: (out_size, zsize) PyTorch layout.  bias: (out_size,).
    Returns (w_t, b2d): w_t is (zsize, N_pad) bf16 with N_pad a multiple of the
    N tile, b2d is (1, N_pad) f32.  Padding columns are zero (sliced off later).
    """
    out_size, zsize = weight.shape
    tn = _choose_tn(out_size)
    n_pad = _round_up(out_size, tn)
    w_t = jnp.zeros((zsize, n_pad), jnp.bfloat16)
    w_t = w_t.at[:, :out_size].set(weight.T.astype(jnp.bfloat16))
    b2d = jnp.zeros((1, n_pad), jnp.float32)
    b2d = b2d.at[:, :out_size].set(bias.astype(jnp.float32))
    return w_t, b2d


@functools.partial(jax.jit, static_argnames=("in_channels", "fmres"))
def gen_conv_res_block32_forward(x, w_t, b2d, *, in_channels, fmres=4):
    """x: (B, ...) flattening to (B, zsize).  w_t/b2d: outputs of
    prepare_linear_params.  Returns (B, in_channels, fmres, fmres) float32."""
    B = x.shape[0]
    x2d = x.reshape(B, -1)
    zsize = x2d.shape[1]
    out_size = in_channels * fmres * fmres

    tn = _choose_tn(out_size)
    n_pad = w_t.shape[1]
    assert w_t.shape[0] == zsize
    assert n_pad == _round_up(out_size, tn)

    tm = _choose_tm(B)
    m_pad = _round_up(B, tm)

    # Pad the (small) activation matrix; weight/bias were padded once at prep.
    xb = jnp.zeros((m_pad, zsize), jnp.bfloat16)
    xb = xb.at[:B].set(x2d.astype(jnp.bfloat16))

    grid = (m_pad // tm, n_pad // tn)
    cost = pl.CostEstimate(
        flops=2 * m_pad * zsize * n_pad,
        transcendentals=m_pad * n_pad,
        bytes_accessed=(m_pad * zsize * 2          # x (bf16)
                        + zsize * n_pad * 2        # weight (bf16)
                        + n_pad * 4                # bias (f32)
                        + m_pad * n_pad * 4),      # output (f32)
    )

    y = pl.pallas_call(
        _linear_sigmoid_kernel,
        out_shape=jax.ShapeDtypeStruct((m_pad, n_pad), jnp.float32),
        grid_spec=pltpu.PrefetchScalarGridSpec(
            num_scalar_prefetch=0,
            grid=grid,
            in_specs=[
                pl.BlockSpec((tm, zsize), lambda i, j: (i, 0)),   # activations
                pl.BlockSpec((zsize, tn), lambda i, j: (0, j)),   # weight tile
                pl.BlockSpec((1, tn), lambda i, j: (0, j)),       # bias tile
            ],
            out_specs=pl.BlockSpec((tm, tn), lambda i, j: (i, j)),
        ),
        compiler_params=pltpu.CompilerParams(
            dimension_semantics=("parallel", "parallel"),
        ),
        cost_estimate=cost,
    )(xb, w_t, b2d)

    # Slice off padding; NCHW view matches PyTorch x.view(B, C, 4, 4).
    return y[:B, :out_size].reshape(B, in_channels, fmres, fmres)


def init_params(key, zsize, out_size):
    """Deterministic init mimicking nn.Linear default (uniform +/- 1/sqrt(fan_in))."""
    kw, kb = jax.random.split(key)
    bound = 1.0 / math.sqrt(zsize)
    weight = jax.random.uniform(kw, (out_size, zsize), jnp.float32, -bound, bound)
    bias = jax.random.uniform(kb, (out_size,), jnp.float32, -bound, bound)
    return weight, bias


def _reference(x, weight, bias, C, fmres):
    B = x.shape[0]
    y = jax.nn.sigmoid(x.reshape(B, -1) @ weight.T + bias)
    return y.reshape(B, C, fmres, fmres)


if __name__ == "__main__":
    key = jax.random.PRNGKey(0)
    k1, k2, k3, k4 = jax.random.split(key, 4)

    # Config 1: module-sized tiny demo (zsize=32, C=4, 4x4 -> out_size=64).
    B, zsize, C, fmres = 2, 32, 4, 4
    out_size = C * fmres * fmres
    x = jax.random.normal(k1, (B, zsize), jnp.float32)
    weight, bias = init_params(k2, zsize, out_size)
    w_t, b2d = prepare_linear_params(weight, bias)          # once, off hot path
    out = gen_conv_res_block32_forward(x, w_t, b2d, in_channels=C, fmres=fmres)
    out = jax.block_until_ready(out)
    ref = _reference(x, weight, bias, C, fmres)
    assert out.shape == (B, C, fmres, fmres)
    assert jnp.allclose(out, ref, atol=2e-2, rtol=2e-2), float(
        jnp.max(jnp.abs(out - ref)))

    # Config 2: larger config exercising N tiling (grid > 1) and M padding.
    B2, zsize2, C2 = 16, 256, 64                              # out_size = 1024
    out_size2 = C2 * fmres * fmres
    x2 = jax.random.normal(k3, (B2, zsize2), jnp.float32)
    weight2, bias2 = init_params(k4, zsize2, out_size2)
    w_t2, b2d2 = prepare_linear_params(weight2, bias2)
    out2 = gen_conv_res_block32_forward(x2, w_t2, b2d2, in_channels=C2,
                                        fmres=fmres)
    out2 = jax.block_until_ready(out2)
    ref2 = _reference(x2, weight2, bias2, C2, fmres)
    assert out2.shape == (B2, C2, fmres, fmres)
    assert jnp.allclose(out2, ref2, atol=2e-2, rtol=2e-2), float(
        jnp.max(jnp.abs(out2 - ref2)))

    print("KERNEL_OK")
</pallas_src>

<mosaic_0001>
module attributes {stable_mosaic.version = 11 : i64} {
  func.func @_linear_sigmoid_kernel(%arg0: i32, %arg1: i32, %arg2: memref<8x32xbf16, #tpu.memory_space<vmem>>, %arg3: memref<32x128xbf16, #tpu.memory_space<vmem>>, %arg4: memref<1x128xf32, #tpu.memory_space<vmem>>, %arg5: memref<8x128xf32, #tpu.memory_space<vmem>>) attributes {dimension_semantics = [#tpu.dimension_semantics<parallel>, #tpu.dimension_semantics<parallel>], iteration_bounds = array<i64: 1, 1>, scalar_prefetch = 0 : i64, scratch_operands = 0 : i64, tpu.core_type = #tpu.core_type<tc>, window_params = [{transform_indices = @transform_0, window_bounds = array<i64: 8, 32>}, {transform_indices = @transform_1, window_bounds = array<i64: 32, 128>}, {transform_indices = @transform_2, window_bounds = array<i64: 1, 128>}, {transform_indices = @transform_3, window_bounds = array<i64: 8, 128>}]} {
    %c0 = arith.constant 0 : index
    %c0_0 = arith.constant 0 : index
    %0 = vector.load %arg2[%c0, %c0_0] : memref<8x32xbf16, #tpu.memory_space<vmem>>, vector<8x32xbf16>
    %c0_1 = arith.constant 0 : index
    %c0_2 = arith.constant 0 : index
    %1 = vector.load %arg3[%c0_1, %c0_2] : memref<32x128xbf16, #tpu.memory_space<vmem>>, vector<32x128xbf16>
    %cst = arith.constant dense<0.000000e+00> : vector<8x128xf32>
    %2 = tpu.matmul %0, %1, %cst {dimension_numbers = #tpu.dot_dimension_numbers<[1], [0], [0], [1], [0, 0, 1, 1], [], []>} : vector<8x32xbf16>, vector<32x128xbf16>, vector<8x128xf32> -> vector<8x128xf32>
    %c0_3 = arith.constant 0 : index
    %c0_4 = arith.constant 0 : index
    %3 = vector.load %arg4[%c0_3, %c0_4] : memref<1x128xf32, #tpu.memory_space<vmem>>, vector<1x128xf32>
    %4 = vector.broadcast %3 : vector<1x128xf32> to vector<8x128xf32>
    %5 = arith.addf %2, %4 : vector<8x128xf32>
    %6 = arith.negf %5 : vector<8x128xf32>
    %7 = math.exp %6 : vector<8x128xf32>
    %cst_5 = arith.constant 1.000000e+00 : f32
    %8 = vector.broadcast %cst_5 : f32 to vector<8x128xf32>
    %9 = arith.addf %8, %7 : vector<8x128xf32>
    %10 = arith.divf %8, %9 : vector<8x128xf32>
    %c0_6 = arith.constant 0 : index
    %c0_7 = arith.constant 0 : index
    %11 = vector.load %arg5[%c0_6, %c0_7] : memref<8x128xf32, #tpu.memory_space<vmem>>, vector<8x128xf32>
    tpu.vector_store %arg5[%c0_6, %c0_7], %10 {strides = array<i32>} : memref<8x128xf32, #tpu.memory_space<vmem>>, vector<8x128xf32>,
    return
  }
  func.func @transform_0(%arg0: i32, %arg1: i32) -> (i32, i32) {
    %c0_i32 = arith.constant 0 : i32
    %c0_i32_0 = arith.constant 0 : i32
    return %arg0, %c0_i32 : i32, i32
  }
  func.func @transform_1(%arg0: i32, %arg1: i32) -> (i32, i32) {
    %c0_i32 = arith.constant 0 : i32
    %c0_i32_0 = arith.constant 0 : i32
    return %c0_i32, %arg1 : i32, i32
  }
  func.func @transform_2(%arg0: i32, %arg1: i32) -> (i32, i32) {
    %c0_i32 = arith.constant 0 : i32
    %c0_i32_0 = arith.constant 0 : i32
    return %c0_i32, %arg1 : i32, i32
  }
  func.func @transform_3(%arg0: i32, %arg1: i32) -> (i32, i32) {
    %c0_i32 = arith.constant 0 : i32
    return %arg0, %arg1 : i32, i32
  }
}

</mosaic_0001>

<llo_original>
// kernel: gen_conv_res_block32_forward.1
$region0: #{gen_conv_res_block32_forward.1}
  #allocation0 [shape = 'u32[]', space=smem, size = 0x4, offset = 0x4, fixed_abs, tag = 'smem constant byte address 0x4 - core index']
  #allocation1 [shape = 'u32[144,128]{1,0:T(1,128)}', space=vmem, size = 0x12000, scoped, tag = 'internal scratch']
  %s0 = inlined_call_operand.vmem [shape: bf16[8,32], index: 0, kind: input, shape index: {}]
  %s1 = inlined_call_operand.hbm [shape: bf16[32,128], index: 1, kind: input, shape index: {}]
  %s2 = inlined_call_operand.vmem [shape: f32[1,128], index: 2, kind: input, shape index: {}]
  %s3 = inlined_call_operand.vmem [shape: f32[8,128], index: 3, kind: output, shape index: {}]
  %s4 = sld [smem:[#allocation0]]
  $region26: #{gen_conv_res_block32_forward.1} parent=0
    _
  %s6 = ssub.s32 1, %s4
  %s7 = scalar_select 0, %s6, %s4
  $region1: #{gen_conv_res_block32_forward.1} parent=0
    #allocation2 [shape = 'u8[8192]{0}', space=vmem, size = 0x2000, scoped, tag = 'input window, operand 1, single buffered']
    #allocation3 [shape = 's32[1]{0}', space=sflag, size = 0x4, scoped, tag = 'scoped memory for gen_conv_res_block32_forward.1']
    %8 = vsyncpa [#allocation3], 0
    // Predicated region
    $region2: #{gen_conv_res_block32_forward.1} parent=1 // pred_check
      _
    $region3: #{gen_conv_res_block32_forward.1} parent=1 // pred_check_branch
      %10 = sbr.rel (0) target = $region5
    $region4: #{gen_conv_res_block32_forward.1} parent=1 // pred_region
      _
    $region5: #{gen_conv_res_block32_forward.1} parent=1 // pred_fallthru
      _
    // Predicated region
    $region6: #{gen_conv_res_block32_forward.1} parent=1 // pred_check
      _
    $region7: #{gen_conv_res_block32_forward.1} parent=1 // pred_check_branch
      %12 = sbr.rel (0) target = $region9
    $region8: #{gen_conv_res_block32_forward.1} parent=1 // pred_region
      %s14 = ssub.s32 256, 256
      %15 = vsyncadd [#allocation3], %s14
      %s16 = sshll.u32 [#allocation2], 4
      %s17 = int_to_ptr.vmem [resolvable:$true] %s16
      %22 = dma.hbm_to_vmem [thread:$0]  %s1, 256, %s17, [#allocation3], 64, 64, 4
    $region9: #{gen_conv_res_block32_forward.1} parent=1 // pred_fallthru
      _
    // Predicated region
    $region10: #{gen_conv_res_block32_forward.1} parent=1 // pred_check
      _
    $region11: #{gen_conv_res_block32_forward.1} parent=1 // pred_check_branch
      %24 = sbr.rel (0) target = $region13
    $region12: #{gen_conv_res_block32_forward.1} parent=1 // pred_region
      _
    $region13: #{gen_conv_res_block32_forward.1} parent=1 // pred_fallthru
      _
    // Predicated region
    $region14: #{gen_conv_res_block32_forward.1} parent=1 // pred_check
      _
    $region15: #{gen_conv_res_block32_forward.1} parent=1 // pred_check_branch
      %26 = sbr.rel (0) target = $region17
    $region16: #{gen_conv_res_block32_forward.1} parent=1 // pred_region
      %27 = dma.done [#allocation3], 256
    $region17: #{gen_conv_res_block32_forward.1} parent=1 // pred_fallthru
      _
    %v29 = vld [vmem:[%s0] sm:$0xf]
    %v30 = vld [vmem:[#allocation2] sm:$0xf]
    %v31 = vld [vmem:[#allocation2 + $0x4] sm:$0xf]
    %v32 = vld [vmem:[#allocation2 + $0x8] sm:$0xf]
    %v33 = vld [vmem:[#allocation2 + $0xc] sm:$0xf]
    %v34 = vld [vmem:[%s2] sm:$0x1]
    %v36 = vlaneseq
    %v37 = vshrl.u32 %v36, 7
    %v38 = vsub.s32 0, %v37
    %v39 = vrot.slane %v34, %v38
    %v45 = vunpack.c.l.b16 %v30
    %v46 = vunpack.c.l.b16 %v31
    %v47 = vunpack.c.l.b16 %v32
    %v48 = vunpack.c.l.b16 %v33
    %v49 = vpack.c.b16 %v46, %v45
    %v50 = vpack.c.b16 %v48, %v47
    %vm53 = vcmask 261120
    %v55 = vsel %vm53, %v29, 0
    %57 = vmatprep.subr.bf16.mxu0 0
    %58 = vmatpush1.bf16.msra.mxu0 %v49
    %59 = vmatprep.subr.bf16.mxu0 0
    %60 = vmatpush1.bf16.msra.mxu0 %v50
    %61 = vmatprep.subr.bf16.mxu0 0
    %62 = vmatpush1.bf16.msra.mxu0 0
    %63 = vmatprep.subr.bf16.mxu0 0
    %64 = vmatpush1.bf16.msra.mxu0 0
    %65 = vmatprep.subr.bf16.mxu0 0
    %66 = vmatpush1.bf16.msra.mxu0 0
    %67 = vmatprep.subr.bf16.mxu0 0
    %68 = vmatpush1.bf16.msra.mxu0 0
    %69 = vmatprep.subr.bf16.mxu0 0
    %70 = vmatpush1.bf16.msra.mxu0 0
    %71 = vmatprep.subr.bf16.mxu0 0
    %72 = vmatpush1.bf16.msra.mxu0 0
    %73 = vmatprep.subr.bf16.mxu0 0
    %74 = vmatpush1.bf16.msra.mxu0 0
    %75 = vmatprep.subr.bf16.mxu0 0
    %76 = vmatpush1.bf16.msra.mxu0 0
    %77 = vmatprep.subr.bf16.mxu0 0
    %78 = vmatpush1.bf16.msra.mxu0 0
    %79 = vmatprep.subr.bf16.mxu0 0
    %80 = vmatpush1.bf16.msra.mxu0 0
    %81 = vmatprep.subr.bf16.mxu0 0
    %82 = vmatpush1.bf16.msra.mxu0 0
    %83 = vmatprep.subr.bf16.mxu0 0
    %84 = vmatpush1.bf16.msra.mxu0 0
    %85 = vmatprep.subr.bf16.mxu0 0
    %86 = vmatpush1.bf16.msra.mxu0 0
    %87 = vmatprep.subr.bf16.mxu0 0
    %88 = vmatpush1.bf16.msra.mxu0 0
    %89 = vmatprep.mubr.bf16.mxu0 0
    %90 = vmatmul.mubr.bf16.gmra.mrb[0].mxu0 %v55
    %v91 = vpop.f32.mrb[0].mxu0
    %v92 = vadd.f32 %v39, %v91
    %v93 = vpop.f32.mrb[0].mxu0
    %v94 = vpop.f32.mrb[0].mxu0
    %v95 = vpop.f32.mrb[0].mxu0
    %96 = vdwg.mxu0
    %v97 = vxor.u32 %v92, 2147483648
    %v98 = vmul.f32 %v97, 1.442695
    %v99 = vpow.pop %v98
    %v100 = vadd.f32 %v99, 1.0
    %v101 = vrcp.pop %v100
    %v102 = vmul.f32 1.0, %v101
    %103 = vst [vmem:[%s3] sm:$0xff] %v102
    // Predicated region
    $region18: #{gen_conv_res_block32_forward.1} parent=1 // pred_check
      _
    $region19: #{gen_conv_res_block32_forward.1} parent=1 // pred_check_branch
      %105 = sbr.rel (0) target = $region21
    $region20: #{gen_conv_res_block32_forward.1} parent=1 // pred_region
      _
    $region21: #{gen_conv_res_block32_forward.1} parent=1 // pred_fallthru
      _
    // Predicated region
    $region22: #{gen_conv_res_block32_forward.1} parent=1 // pred_check
      _
    $region23: #{gen_conv_res_block32_forward.1} parent=1 // pred_check_branch
      %107 = sbr.rel (0) target = $region25
    $region24: #{gen_conv_res_block32_forward.1} parent=1 // pred_region
      _
    $region25: #{gen_conv_res_block32_forward.1} parent=1 // pred_fallthru
      _
    %108 = vsyncpa [#allocation3], 1

</llo_original>
